<compile_context>
chip_gen: v5e
topology: v5e:2x2
jax: 0.10.0
libtpu: 0.0.40
codegen_flags: <defaults>
</compile_context>

<pallas_src>
import jax
import jax.numpy as jnp
from jax.experimental import pallas as pl
from jax.experimental.pallas import tpu as pltpu

HIDDEN = 64
LN_EPS = 1e-5

MAX_TILE = 4096                      # hard cap on batch rows per grid step
TILE_VMEM_BUDGET = 12 * 1024 * 1024  # bytes budgeted for per-tile working set
VMEM_LIMIT_BYTES = 32 * 1024 * 1024  # explicit scoped-VMEM limit (safe on v5e/v6e/v7x)

# Row layout of the packed parameter block (8, HIDDEN):
#   0: b1   1: ln1.weight   2: ln1.bias
#   3: b2   4: ln2.weight   5: ln2.bias
#   6: w3 (value-head weight as a row vector)
#   7: b3 broadcast across lanes


def _cdiv(a, b):
    return -(-a // b)


def _round_up(a, m):
    return ((a + m - 1) // m) * m


def _value_net_kernel(x_ref, w1_ref, w2_ref, p_ref, o_ref):
    x = x_ref[...]
    if x.dtype != jnp.float32:          # supports bf16 inputs; no-op for f32
        x = x.astype(jnp.float32)

    p = p_ref[...]                      # (8, HIDDEN), VMEM-resident across grid steps
    b1, g1, be1 = p[0:1, :], p[1:2, :], p[2:3, :]
    b2, g2, be2 = p[3:4, :], p[4:5, :], p[5:6, :]
    w3 = p[6:7, :]                      # (1, HIDDEN)
    b3 = p[7:8, 0:1]                    # (1, 1)

    def ln_relu(h, g, b):
        # Two-pass variance E[(h-mu)^2] -- matches PyTorch LayerNorm, no cancellation.
        mu = jnp.mean(h, axis=-1, keepdims=True)
        d = h - mu
        var = jnp.mean(d * d, axis=-1, keepdims=True)
        return jnp.maximum(d * jax.lax.rsqrt(var + LN_EPS) * g + b, 0.0)

    # ---- fc1 + ln1 + relu (dropout = identity in eval mode) ----------------
    h = jnp.dot(x, w1_ref[...], preferred_element_type=jnp.float32) + b1
    h = ln_relu(h, g1, be1)

    # ---- fc2 + ln2 + relu (dropout = identity in eval mode) ----------------
    h = jnp.dot(h, w2_ref[...], preferred_element_type=jnp.float32) + b2
    h = ln_relu(h, g2, be2)

    # ---- fc3 value head: MXU contraction producing a lane-dense (1, tb) row.
    v = jax.lax.dot_general(
        w3, h, (((1,), (1,)), ((), ())),
        preferred_element_type=jnp.float32) + b3          # (1, tb)
    o_ref[...] = v[None].astype(o_ref.dtype)              # (1, 1, tb)


def _choose_tiling(batch, state_dim):
    """Pick (tile_rows, num_tiles) from the VMEM budget and batch size."""
    # Per-row VMEM bytes: double-buffered x block + hidden temporaries + out row.
    per_row = 4 * (2 * state_dim + 4 * HIDDEN + 2)
    budget_tb = (TILE_VMEM_BUDGET // per_row) // 8 * 8
    budget_tb = max(8, min(MAX_TILE, budget_tb))

    # >= 2 grid steps for any non-trivial batch so both v7x TensorCores get work.
    min_tiles = 2 if batch > 8 else 1
    n_tiles = max(min_tiles, _cdiv(batch, budget_tb))

    # Balanced tiles: minimise padded rows instead of always using the max tile.
    tb = min(budget_tb, _round_up(_cdiv(batch, n_tiles), 8))
    n_tiles = _cdiv(batch, tb)
    return tb, n_tiles


def value_network_forward(x, params):
    """x: (batch, state_dim) float32/bfloat16 -> (batch, 1) float32."""
    w1, w2, packed = params
    batch, state_dim = x.shape

    tb, n_tiles = _choose_tiling(batch, state_dim)
    padded = n_tiles * tb
    if padded != batch:
        x = jnp.pad(x, ((0, padded - batch), (0, 0)))

    out = pl.pallas_call(
        _value_net_kernel,
        out_shape=jax.ShapeDtypeStruct((n_tiles, 1, tb), jnp.float32),
        grid=(n_tiles,),
        in_specs=[
            pl.BlockSpec((tb, state_dim), lambda i: (i, 0)),       # x tile (pipelined)
            pl.BlockSpec((state_dim, HIDDEN), lambda i: (0, 0)),   # W1 resident
            pl.BlockSpec((HIDDEN, HIDDEN), lambda i: (0, 0)),      # W2 resident
            pl.BlockSpec((8, HIDDEN), lambda i: (0, 0)),           # packed vectors
        ],
        # Lane-dense output: last two block dims equal the full array dims.
        out_specs=pl.BlockSpec((1, 1, tb), lambda i: (i, 0, 0)),
        compiler_params=pltpu.CompilerParams(
            dimension_semantics=("parallel",),
            vmem_limit_bytes=VMEM_LIMIT_BYTES,
        ),
    )(x, w1, w2, packed)

    # (n_tiles, 1, tb) -> (padded, 1) -> (batch, 1); row-major flatten matches
    # padded-row ordering exactly.
    return out.reshape(padded, 1)[:batch]


def init_params(key, state_dim):
    """Deterministic synthetic parameters matching nn.Linear / nn.LayerNorm shapes.
    Linear weights are stored transposed: (in_features, out_features)."""
    ks = jax.random.split(key, 6)

    def uniform_fan_in(k, shape, fan_in):
        bound = 1.0 / jnp.sqrt(fan_in)
        return jax.random.uniform(k, shape, jnp.float32, -bound, bound)

    w1 = uniform_fan_in(ks[0], (state_dim, HIDDEN), state_dim)
    b1 = uniform_fan_in(ks[1], (HIDDEN,), state_dim)
    g1 = jnp.ones((HIDDEN,), jnp.float32)       # LayerNorm weight
    be1 = jnp.zeros((HIDDEN,), jnp.float32)     # LayerNorm bias

    w2 = uniform_fan_in(ks[2], (HIDDEN, HIDDEN), HIDDEN)
    b2 = uniform_fan_in(ks[3], (HIDDEN,), HIDDEN)
    g2 = jnp.ones((HIDDEN,), jnp.float32)
    be2 = jnp.zeros((HIDDEN,), jnp.float32)

    w3 = uniform_fan_in(ks[4], (HIDDEN,), HIDDEN)   # value-head weight as row vector
    b3 = uniform_fan_in(ks[5], (), HIDDEN)

    packed = jnp.stack([
        b1, g1, be1,
        b2, g2, be2,
        w3,
        jnp.full((HIDDEN,), b3, jnp.float32),
    ], axis=0)                                       # (8, HIDDEN)

    return (w1, w2, packed)


def _reference_forward(x, params):
    """Pure-JAX reference of the PyTorch forward (eval mode)."""
    w1, w2, p = params
    b1, g1, be1 = p[0], p[1], p[2]
    b2, g2, be2 = p[3], p[4], p[5]
    w3, b3 = p[6], p[7, 0]

    def ln(h, g, b):
        mu = jnp.mean(h, axis=-1, keepdims=True)
        var = jnp.mean(jnp.square(h - mu), axis=-1, keepdims=True)
        return (h - mu) * jax.lax.rsqrt(var + LN_EPS) * g + b

    h = jnp.maximum(ln(x.astype(jnp.float32) @ w1 + b1, g1, be1), 0.0)
    h = jnp.maximum(ln(h @ w2 + b2, g2, be2), 0.0)
    return h @ w3[:, None] + b3


if __name__ == "__main__":
    key = jax.random.PRNGKey(0)
    k_params, k_x1, k_x2 = jax.random.split(key, 3)

    state_dim = 32
    params = init_params(k_params, state_dim)

    # Single-tile path.
    x1 = jax.random.normal(k_x1, (8, state_dim), jnp.float32)
    out1 = jax.block_until_ready(value_network_forward(x1, params))
    ref1 = _reference_forward(x1, params)
    assert out1.shape == (8, 1), out1.shape
    assert jnp.allclose(out1, ref1, atol=1e-4, rtol=1e-4), (out1, ref1)

    # Multi-tile path (exercises batch padding + lane-dense output reshape).
    x2 = jax.random.normal(k_x2, (24, state_dim), jnp.float32)
    out2 = jax.block_until_ready(value_network_forward(x2, params))
    ref2 = _reference_forward(x2, params)
    assert out2.shape == (24, 1), out2.shape
    assert jnp.allclose(out2, ref2, atol=1e-4, rtol=1e-4), (out2, ref2)

    print("KERNEL_OK")
</pallas_src>

<mosaic_0001>
module attributes {stable_mosaic.version = 11 : i64} {
  func.func @_value_net_kernel(%arg0: i32, %arg1: memref<8x32xf32, #tpu.memory_space<vmem>>, %arg2: memref<32x64xf32, #tpu.memory_space<vmem>>, %arg3: memref<64x64xf32, #tpu.memory_space<vmem>>, %arg4: memref<8x64xf32, #tpu.memory_space<vmem>>, %arg5: memref<1x1x8xf32, #tpu.memory_space<vmem>>) attributes {dimension_semantics = [#tpu.dimension_semantics<parallel>], iteration_bounds = array<i64: 1>, scalar_prefetch = 0 : i64, scratch_operands = 0 : i64, tpu.core_type = #tpu.core_type<tc>, window_params = [{transform_indices = @transform_0, window_bounds = array<i64: 8, 32>}, {pipeline_mode = #tpu.pipeline_mode<synchronous>, transform_indices = @transform_1, window_bounds = array<i64: 32, 64>}, {pipeline_mode = #tpu.pipeline_mode<synchronous>, transform_indices = @transform_2, window_bounds = array<i64: 64, 64>}, {pipeline_mode = #tpu.pipeline_mode<synchronous>, transform_indices = @transform_3, window_bounds = array<i64: 8, 64>}, {transform_indices = @transform_4, window_bounds = array<i64: 1, 1, 8>}]} {
    %c0 = arith.constant 0 : index
    %c0_0 = arith.constant 0 : index
    %0 = vector.load %arg1[%c0, %c0_0] : memref<8x32xf32, #tpu.memory_space<vmem>>, vector<8x32xf32>
    %c0_1 = arith.constant 0 : index
    %c0_2 = arith.constant 0 : index
    %1 = vector.load %arg4[%c0_1, %c0_2] : memref<8x64xf32, #tpu.memory_space<vmem>>, vector<8x64xf32>
    %2 = vector.extract_strided_slice %1 {offsets = [0, 0], sizes = [1, 64], strides = [1, 1]} : vector<8x64xf32> to vector<1x64xf32>
    %3 = vector.extract_strided_slice %1 {offsets = [1, 0], sizes = [1, 64], strides = [1, 1]} : vector<8x64xf32> to vector<1x64xf32>
    %4 = vector.extract_strided_slice %1 {offsets = [2, 0], sizes = [1, 64], strides = [1, 1]} : vector<8x64xf32> to vector<1x64xf32>
    %5 = vector.extract_strided_slice %1 {offsets = [3, 0], sizes = [1, 64], strides = [1, 1]} : vector<8x64xf32> to vector<1x64xf32>
    %6 = vector.extract_strided_slice %1 {offsets = [4, 0], sizes = [1, 64], strides = [1, 1]} : vector<8x64xf32> to vector<1x64xf32>
    %7 = vector.extract_strided_slice %1 {offsets = [5, 0], sizes = [1, 64], strides = [1, 1]} : vector<8x64xf32> to vector<1x64xf32>
    %8 = vector.extract_strided_slice %1 {offsets = [6, 0], sizes = [1, 64], strides = [1, 1]} : vector<8x64xf32> to vector<1x64xf32>
    %9 = vector.extract_strided_slice %1 {offsets = [7, 0], sizes = [1, 1], strides = [1, 1]} : vector<8x64xf32> to vector<1x1xf32>
    %c0_3 = arith.constant 0 : index
    %c0_4 = arith.constant 0 : index
    %10 = vector.load %arg2[%c0_3, %c0_4] : memref<32x64xf32, #tpu.memory_space<vmem>>, vector<32x64xf32>
    %cst = arith.constant dense<0.000000e+00> : vector<8x64xf32>
    %11 = tpu.matmul %0, %10, %cst {dimension_numbers = #tpu.dot_dimension_numbers<[1], [0], [0], [1], [0, 0, 1, 1], [], []>} : vector<8x32xf32>, vector<32x64xf32>, vector<8x64xf32> -> vector<8x64xf32>
    %12 = vector.broadcast %2 : vector<1x64xf32> to vector<8x64xf32>
    %13 = arith.addf %11, %12 : vector<8x64xf32>
    %cst_5 = arith.constant dense<0.000000e+00> : vector<8xf32>
    %14 = vector.multi_reduction <add>, %13, %cst_5 [1] : vector<8x64xf32> to vector<8xf32>
    %15 = vector.shape_cast %14 : vector<8xf32> to vector<8x1xf32>
    %cst_6 = arith.constant 6.400000e+01 : f32
    %16 = vector.broadcast %cst_6 : f32 to vector<8x1xf32>
    %17 = arith.divf %15, %16 : vector<8x1xf32>
    %18 = vector.broadcast %17 : vector<8x1xf32> to vector<8x64xf32>
    %19 = arith.subf %13, %18 : vector<8x64xf32>
    %20 = arith.mulf %19, %19 : vector<8x64xf32>
    %cst_7 = arith.constant dense<0.000000e+00> : vector<8xf32>
    %21 = vector.multi_reduction <add>, %20, %cst_7 [1] : vector<8x64xf32> to vector<8xf32>
    %22 = vector.shape_cast %21 : vector<8xf32> to vector<8x1xf32>
    %cst_8 = arith.constant 6.400000e+01 : f32
    %23 = vector.broadcast %cst_8 : f32 to vector<8x1xf32>
    %24 = arith.divf %22, %23 : vector<8x1xf32>
    %cst_9 = arith.constant 9.99999974E-6 : f32
    %25 = vector.broadcast %cst_9 : f32 to vector<8x1xf32>
    %26 = arith.addf %24, %25 : vector<8x1xf32>
    %27 = math.rsqrt %26 : vector<8x1xf32>
    %28 = vector.broadcast %27 : vector<8x1xf32> to vector<8x64xf32>
    %29 = arith.mulf %19, %28 : vector<8x64xf32>
    %30 = vector.broadcast %3 : vector<1x64xf32> to vector<8x64xf32>
    %31 = arith.mulf %29, %30 : vector<8x64xf32>
    %32 = vector.broadcast %4 : vector<1x64xf32> to vector<8x64xf32>
    %33 = arith.addf %31, %32 : vector<8x64xf32>
    %cst_10 = arith.constant 0.000000e+00 : f32
    %34 = vector.broadcast %cst_10 : f32 to vector<8x64xf32>
    %35 = arith.maximumf %33, %34 : vector<8x64xf32>
    %c0_11 = arith.constant 0 : index
    %c0_12 = arith.constant 0 : index
    %36 = vector.load %arg3[%c0_11, %c0_12] : memref<64x64xf32, #tpu.memory_space<vmem>>, vector<64x64xf32>
    %cst_13 = arith.constant dense<0.000000e+00> : vector<8x64xf32>
    %37 = tpu.matmul %35, %36, %cst_13 {dimension_numbers = #tpu.dot_dimension_numbers<[1], [0], [0], [1], [0, 0, 1, 1], [], []>} : vector<8x64xf32>, vector<64x64xf32>, vector<8x64xf32> -> vector<8x64xf32>
    %38 = vector.broadcast %5 : vector<1x64xf32> to vector<8x64xf32>
    %39 = arith.addf %37, %38 : vector<8x64xf32>
    %cst_14 = arith.constant dense<0.000000e+00> : vector<8xf32>
    %40 = vector.multi_reduction <add>, %39, %cst_14 [1] : vector<8x64xf32> to vector<8xf32>
    %41 = vector.shape_cast %40 : vector<8xf32> to vector<8x1xf32>
    %cst_15 = arith.constant 6.400000e+01 : f32
    %42 = vector.broadcast %cst_15 : f32 to vector<8x1xf32>
    %43 = arith.divf %41, %42 : vector<8x1xf32>
    %44 = vector.broadcast %43 : vector<8x1xf32> to vector<8x64xf32>
    %45 = arith.subf %39, %44 : vector<8x64xf32>
    %46 = arith.mulf %45, %45 : vector<8x64xf32>
    %cst_16 = arith.constant dense<0.000000e+00> : vector<8xf32>
    %47 = vector.multi_reduction <add>, %46, %cst_16 [1] : vector<8x64xf32> to vector<8xf32>
    %48 = vector.shape_cast %47 : vector<8xf32> to vector<8x1xf32>
    %cst_17 = arith.constant 6.400000e+01 : f32
    %49 = vector.broadcast %cst_17 : f32 to vector<8x1xf32>
    %50 = arith.divf %48, %49 : vector<8x1xf32>
    %cst_18 = arith.constant 9.99999974E-6 : f32
    %51 = vector.broadcast %cst_18 : f32 to vector<8x1xf32>
    %52 = arith.addf %50, %51 : vector<8x1xf32>
    %53 = math.rsqrt %52 : vector<8x1xf32>
    %54 = vector.broadcast %53 : vector<8x1xf32> to vector<8x64xf32>
    %55 = arith.mulf %45, %54 : vector<8x64xf32>
    %56 = vector.broadcast %6 : vector<1x64xf32> to vector<8x64xf32>
    %57 = arith.mulf %55, %56 : vector<8x64xf32>
    %58 = vector.broadcast %7 : vector<1x64xf32> to vector<8x64xf32>
    %59 = arith.addf %57, %58 : vector<8x64xf32>
    %cst_19 = arith.constant 0.000000e+00 : f32
    %60 = vector.broadcast %cst_19 : f32 to vector<8x64xf32>
    %61 = arith.maximumf %59, %60 : vector<8x64xf32>
    %cst_20 = arith.constant dense<0.000000e+00> : vector<1x8xf32>
    %62 = tpu.matmul %8, %61, %cst_20 {dimension_numbers = #tpu.dot_dimension_numbers<[1], [1], [0], [0], [0, 0, 1, 0], [], []>} : vector<1x64xf32>, vector<8x64xf32>, vector<1x8xf32> -> vector<1x8xf32>
    %63 = vector.broadcast %9 : vector<1x1xf32> to vector<1x8xf32>
    %64 = arith.addf %62, %63 : vector<1x8xf32>
    %65 = vector.shape_cast %64 : vector<1x8xf32> to vector<1x1x8xf32>
    %c0_21 = arith.constant 0 : index
    %c0_22 = arith.constant 0 : index
    %c0_23 = arith.constant 0 : index
    %66 = vector.load %arg5[%c0_21, %c0_22, %c0_23] : memref<1x1x8xf32, #tpu.memory_space<vmem>>, vector<1x1x8xf32>
    tpu.vector_store %arg5[%c0_21, %c0_22, %c0_23], %65 {strides = array<i32>} : memref<1x1x8xf32, #tpu.memory_space<vmem>>, vector<1x1x8xf32>,
    return
  }
  func.func @transform_0(%arg0: i32) -> (i32, i32) {
    %c0_i32 = arith.constant 0 : i32
    %c0_i32_0 = arith.constant 0 : i32
    return %arg0, %c0_i32 : i32, i32
  }
  func.func @transform_1(%arg0: i32) -> (i32, i32) {
    %c0_i32 = arith.constant 0 : i32
    %c0_i32_0 = arith.constant 0 : i32
    %c0_i32_1 = arith.constant 0 : i32
    return %c0_i32, %c0_i32_0 : i32, i32
  }
  func.func @transform_2(%arg0: i32) -> (i32, i32) {
    %c0_i32 = arith.constant 0 : i32
    %c0_i32_0 = arith.constant 0 : i32
    %c0_i32_1 = arith.constant 0 : i32
    return %c0_i32, %c0_i32_0 : i32, i32
  }
  func.func @transform_3(%arg0: i32) -> (i32, i32) {
    %c0_i32 = arith.constant 0 : i32
    %c0_i32_0 = arith.constant 0 : i32
    %c0_i32_1 = arith.constant 0 : i32
    return %c0_i32, %c0_i32_0 : i32, i32
  }
  func.func @transform_4(%arg0: i32) -> (i32, i32, i32) {
    %c0_i32 = arith.constant 0 : i32
    %c0_i32_0 = arith.constant 0 : i32
    %c0_i32_1 = arith.constant 0 : i32
    return %arg0, %c0_i32, %c0_i32_0 : i32, i32, i32
  }
}

</mosaic_0001>

<llo_original>
// kernel: tpu_custom_call.1
$region0: #{tpu_custom_call.1}
  #allocation0 [shape = 'u32[]', space=smem, size = 0x4, offset = 0x4, fixed_abs, tag = 'smem constant byte address 0x4 - core index']
  #allocation1 [shape = 'u32[72,128]{1,0:T(1,128)}', space=vmem, size = 0x9000, scoped, tag = 'internal scratch']
  %s0 = inlined_call_operand.hbm [shape: f32[8,32], index: 0, kind: input, shape index: {}]
  %s1 = inlined_call_operand.hbm [shape: f32[32,64], index: 1, kind: input, shape index: {}]
  %s2 = inlined_call_operand.hbm [shape: f32[64,64], index: 2, kind: input, shape index: {}]
  %s3 = inlined_call_operand.hbm [shape: f32[8,64], index: 3, kind: input, shape index: {}]
  %s4 = inlined_call_operand.hbm [shape: f32[1,1,8], index: 4, kind: output, shape index: {}]
  %s5 = sld [smem:[#allocation0]]
  $region42: #{tpu_custom_call.1} parent=0
    _
  %s7 = ssub.s32 1, %s5
  %s8 = scalar_select 0, %s7, %s5
  $region1: #{tpu_custom_call.1} parent=0
    #allocation2 [shape = 'u8[4096]{0}', space=vmem, size = 0x1000, scoped, tag = 'input window, operand 0, single buffered']
    #allocation3 [shape = 's32[1]{0}', space=sflag, size = 0x4, scoped, tag = 'scoped memory for tpu_custom_call.1']
    #allocation4 [shape = 's32[1]{0}', space=sflag, size = 0x4, scoped, tag = 'scoped memory for tpu_custom_call.1']
    #allocation5 [shape = 'u8[16384]{0}', space=vmem, size = 0x4000, scoped, tag = 'input window, operand 1, single buffered']
    #allocation6 [shape = 's32[1]{0}', space=sflag, size = 0x4, scoped, tag = 'scoped memory for tpu_custom_call.1']
    #allocation7 [shape = 'u8[32768]{0}', space=vmem, size = 0x8000, scoped, tag = 'input window, operand 2, single buffered']
    #allocation8 [shape = 'u8[4096]{0}', space=vmem, size = 0x1000, scoped, tag = 'input window, operand 3, single buffered']
    #allocation9 [shape = 's32[1]{0}', space=sflag, size = 0x4, scoped, tag = 'scoped memory for tpu_custom_call.1']
    #allocation10 [shape = 'u8[512]{0}', space=vmem, size = 0x400, scoped, tag = 'output window, operand 0, single buffered']
    %9 = vsyncpa [#allocation3], 0
    %10 = vsyncpa [#allocation6], 0
    %11 = vsyncpa [#allocation9], 0
    %12 = vsyncpa [#allocation4], 0
    // Predicated region
    $region2: #{tpu_custom_call.1} parent=1 // pred_check
      _
    $region3: #{tpu_custom_call.1} parent=1 // pred_check_branch
      %14 = sbr.rel (0) target = $region5
    $region4: #{tpu_custom_call.1} parent=1 // pred_region
      %16 = vsyncadd [#allocation3], 0
      %s18 = sshll.u32 %s0, 4
      %s19 = int_to_ptr.hbm [resolvable:$true] %s18
      %s20 = sshll.u32 [#allocation2], 4
      %s21 = int_to_ptr.vmem [resolvable:$true] %s20
      %23 = dma.hbm_to_vmem [thread:$0]  %s19, 128, %s21, [#allocation3]
    $region5: #{tpu_custom_call.1} parent=1 // pred_fallthru
      _
    // Predicated region
    $region6: #{tpu_custom_call.1} parent=1 // pred_check
      _
    $region7: #{tpu_custom_call.1} parent=1 // pred_check_branch
      %25 = sbr.rel (0) target = $region9
    $region8: #{tpu_custom_call.1} parent=1 // pred_region
      %27 = vsyncadd [#allocation6], 0
      %s28 = sshll.u32 %s1, 4
      %s29 = int_to_ptr.hbm [resolvable:$true] %s28
      %s30 = sshll.u32 [#allocation5], 4
      %s31 = int_to_ptr.vmem [resolvable:$true] %s30
      %36 = dma.hbm_to_vmem [thread:$0]  %s29, 512, %s31, [#allocation6], 128, 128, 8
    $region9: #{tpu_custom_call.1} parent=1 // pred_fallthru
      _
    // Predicated region
    $region10: #{tpu_custom_call.1} parent=1 // pred_check
      _
    $region11: #{tpu_custom_call.1} parent=1 // pred_check_branch
      %38 = sbr.rel (0) target = $region13
    $region12: #{tpu_custom_call.1} parent=1 // pred_region
      %40 = vsyncadd [#allocation6], 0
      %s41 = sshll.u32 %s2, 4
      %s42 = int_to_ptr.hbm [resolvable:$true] %s41
      %s43 = sshll.u32 [#allocation7], 4
      %s44 = int_to_ptr.vmem [resolvable:$true] %s43
      %49 = dma.hbm_to_vmem [thread:$0]  %s42, 1024, %s44, [#allocation6], 128, 128, 8
    $region13: #{tpu_custom_call.1} parent=1 // pred_fallthru
      _
    // Predicated region
    $region14: #{tpu_custom_call.1} parent=1 // pred_check
      _
    $region15: #{tpu_custom_call.1} parent=1 // pred_check_branch
      %51 = sbr.rel (0) target = $region17
    $region16: #{tpu_custom_call.1} parent=1 // pred_region
      %53 = vsyncadd [#allocation9], 0
      %s55 = sshll.u32 %s3, 4
      %s56 = int_to_ptr.hbm [resolvable:$true] %s55
      %s57 = sshll.u32 [#allocation8], 4
      %s58 = int_to_ptr.vmem [resolvable:$true] %s57
      %60 = dma.hbm_to_vmem [thread:$0]  %s56, 128, %s58, [#allocation9]
    $region17: #{tpu_custom_call.1} parent=1 // pred_fallthru
      _
    // Predicated region
    $region18: #{tpu_custom_call.1} parent=1 // pred_check
      _
    $region19: #{tpu_custom_call.1} parent=1 // pred_check_branch
      %62 = sbr.rel (0) target = $region21
    $region20: #{tpu_custom_call.1} parent=1 // pred_region
      %64 = dma.done [#allocation3], 128
    $region21: #{tpu_custom_call.1} parent=1 // pred_fallthru
      _
    // Predicated region
    $region22: #{tpu_custom_call.1} parent=1 // pred_check
      _
    $region23: #{tpu_custom_call.1} parent=1 // pred_check_branch
      %66 = sbr.rel (0) target = $region25
    $region24: #{tpu_custom_call.1} parent=1 // pred_region
      %68 = dma.done [#allocation6], 512
    $region25: #{tpu_custom_call.1} parent=1 // pred_fallthru
      _
    // Predicated region
    $region26: #{tpu_custom_call.1} parent=1 // pred_check
      _
    $region27: #{tpu_custom_call.1} parent=1 // pred_check_branch
      %70 = sbr.rel (0) target = $region29
    $region28: #{tpu_custom_call.1} parent=1 // pred_region
      %72 = dma.done [#allocation6], 1024
    $region29: #{tpu_custom_call.1} parent=1 // pred_fallthru
      _
    // Predicated region
    $region30: #{tpu_custom_call.1} parent=1 // pred_check
      _
    $region31: #{tpu_custom_call.1} parent=1 // pred_check_branch
      %74 = sbr.rel (0) target = $region33
    $region32: #{tpu_custom_call.1} parent=1 // pred_region
      %76 = dma.done [#allocation9], 128
    $region33: #{tpu_custom_call.1} parent=1 // pred_fallthru
      _
    %v77 = vld [vmem:[#allocation2] sm:$0xff]
    %v78 = vld [vmem:[#allocation8] sm:$0xff]
    %v79 = vld [vmem:[#allocation5] sm:$0xff]
    %v80 = vld [vmem:[#allocation5 + $0x8] sm:$0xff]
    %v81 = vld [vmem:[#allocation5 + $0x10] sm:$0xff]
    %v82 = vld [vmem:[#allocation5 + $0x18] sm:$0xff]
    %v83 = vperm.slane %v78, 0
    %vm84 = vcmask 261120
    %v86 = vsel %vm84, %v77, 0
    %88 = vmatpush.msra.mxu0 0.0
    %89 = vmatpush.msra.mxu0 0.0
    %90 = vmatpush.msra.mxu0 0.0
    %91 = vmatpush.msra.mxu0 0.0
    %92 = vmatpush.msra.mxu0 0.0
    %93 = vmatpush.msra.mxu0 0.0
    %94 = vmatpush.msra.mxu0 0.0
    %95 = vmatpush.msra.mxu0 0.0
    %96 = vmatpush.msra.mxu0 0.0
    %97 = vmatpush.msra.mxu0 0.0
    %98 = vmatpush.msra.mxu0 0.0
    %99 = vmatpush.msra.mxu0 0.0
    %100 = vmatpush.msra.mxu0 %v82
    %101 = vmatpush.msra.mxu0 %v81
    %102 = vmatpush.msra.mxu0 %v80
    %103 = vmatpush.msra.mxu0 %v79
    %104 = vmatmul.f32.gmra.mxu0 %v86
    %v105 = vpop.f32.mrf.mxu0
    %v106 = vadd.f32 %v83, %v105
    %107 = vdwg.mxu0
    %vm108 = vcmask 523264
    %v109 = vsel %vm108, %v106, 0.0
    %110 = vadd.xlane.f32.xlu0 %v109
    %v111 = vpop.xlane.xlu0 %110
    %v112 = vrcp.pop 64.0
    %v113 = vmul.f32 64.0, %v112
    %v114 = vsub.f32 1.0, %v113
    %v115 = vmul.f32 %v112, %v114
    %v116 = vadd.f32 %v112, %v115
    %vm117 = vweird.f32 %v112
    %v118 = vsel %vm117, %v112, %v116
    %v119 = vmul.f32 %v111, %v118
    %v120 = vsub.f32 %v106, %v119
    %v121 = vmul.f32 %v120, %v120
    %v122 = vsel %vm108, %v121, 0.0
    %123 = vadd.xlane.f32.xlu0 %v122
    %v124 = vpop.xlane.xlu0 %123
    %v125 = vmul.f32 %v124, %v118
    %v126 = vadd.f32 %v125, 1e-05
    %v127 = vrsqrt.pop %v126
    %v128 = vmul.f32 %v127, %v126
    %v129 = vmul.f32 %v128, %v127
    %v130 = vmul.f32 0.5, %v129
    %v131 = vsub.f32 1.5, %v130
    %v132 = vmul.f32 %v127, %v131
    %vm133 = vweird.f32 %v126
    %vm134 = vweird.f32 %v127
    %vm135 = vmor %vm133, %vm134
    %v136 = vsel %vm135, %v127, %v132
    %v137 = vmul.f32 %v120, %v136
    %v138 = vperm.slane %v78, 1
    %v139 = vmul.f32 %v137, %v138
    %v140 = vperm.slane %v78, 2
    %v141 = vadd.f32 %v139, %v140
    %v142 = vmax.f32 %v141, 0.0
    %v143 = vld [vmem:[#allocation7] sm:$0xff]
    %v144 = vld [vmem:[#allocation7 + $0x8] sm:$0xff]
    %v145 = vld [vmem:[#allocation7 + $0x10] sm:$0xff]
    %v146 = vld [vmem:[#allocation7 + $0x18] sm:$0xff]
    %v147 = vld [vmem:[#allocation7 + $0x20] sm:$0xff]
    %v148 = vld [vmem:[#allocation7 + $0x28] sm:$0xff]
    %v149 = vld [vmem:[#allocation7 + $0x30] sm:$0xff]
    %v150 = vld [vmem:[#allocation7 + $0x38] sm:$0xff]
    %v151 = vperm.slane %v78, 3
    %v153 = vsel %vm108, %v142, 0
    %155 = vmatpush.msra.mxu0 0.0
    %156 = vmatpush.msra.mxu0 0.0
    %157 = vmatpush.msra.mxu0 0.0
    %158 = vmatpush.msra.mxu0 0.0
    %159 = vmatpush.msra.mxu0 0.0
    %160 = vmatpush.msra.mxu0 0.0
    %161 = vmatpush.msra.mxu0 0.0
    %162 = vmatpush.msra.mxu0 0.0
    %163 = vmatpush.msra.mxu0 %v150
    %164 = vmatpush.msra.mxu0 %v149
    %165 = vmatpush.msra.mxu0 %v148
    %166 = vmatpush.msra.mxu0 %v147
    %167 = vmatpush.msra.mxu0 %v146
    %168 = vmatpush.msra.mxu0 %v145
    %169 = vmatpush.msra.mxu0 %v144
    %170 = vmatpush.msra.mxu0 %v143
    %171 = vmatmul.f32.gmra.mxu0 %v153
    %v172 = vpop.f32.mrf.mxu0
    %v173 = vadd.f32 %v151, %v172
    %174 = vdwg.mxu0
    %v175 = vsel %vm108, %v173, 0.0
    %176 = vadd.xlane.f32.xlu0 %v175
    %v177 = vpop.xlane.xlu0 %176
    %v178 = vmul.f32 %v177, %v118
    %v179 = vsub.f32 %v173, %v178
    %v180 = vmul.f32 %v179, %v179
    %v181 = vsel %vm108, %v180, 0.0
    %182 = vadd.xlane.f32.xlu0 %v181
    %v183 = vpop.xlane.xlu0 %182
    %v184 = vmul.f32 %v183, %v118
    %v185 = vadd.f32 %v184, 1e-05
    %v186 = vrsqrt.pop %v185
    %v187 = vmul.f32 %v186, %v185
    %v188 = vmul.f32 %v187, %v186
    %v189 = vmul.f32 0.5, %v188
    %v190 = vsub.f32 1.5, %v189
    %v191 = vmul.f32 %v186, %v190
    %vm192 = vweird.f32 %v185
    %vm193 = vweird.f32 %v186
    %vm194 = vmor %vm192, %vm193
    %v195 = vsel %vm194, %v186, %v191
    %v196 = vmul.f32 %v179, %v195
    %v197 = vperm.slane %v78, 4
    %v198 = vmul.f32 %v196, %v197
    %v199 = vperm.slane %v78, 5
    %v200 = vadd.f32 %v198, %v199
    %v201 = vmax.f32 %v200, 0.0
    %203 = vset.pattern.permute.xlu0 0
    %204 = vperm.xlu0 %203, %v78
    %v205 = vpop.permute.xlu0 %204
    %v206 = vrot.slane %v78, 6
    %v207 = vrot.slane %v205, 7
    %v209 = vsel %vm108, %v206, 0
    %v212 = vsel %vm108, %v201, 0
    %214 = vmatpush.xpose.msra.mxu0 0.0
    %215 = vmatpush.xpose.msra.mxu0 0.0
    %216 = vmatpush.xpose.msra.mxu0 0.0
    %217 = vmatpush.xpose.msra.mxu0 0.0
    %218 = vmatpush.xpose.msra.mxu0 0.0
    %219 = vmatpush.xpose.msra.mxu0 0.0
    %220 = vmatpush.xpose.msra.mxu0 0.0
    %221 = vmatpush.xpose.msra.mxu0 0.0
    %222 = vmatpush.xpose.msra.mxu0 0.0
    %223 = vmatpush.xpose.msra.mxu0 0.0
    %224 = vmatpush.xpose.msra.mxu0 0.0
    %225 = vmatpush.xpose.msra.mxu0 0.0
    %226 = vmatpush.xpose.msra.mxu0 0.0
    %227 = vmatpush.xpose.msra.mxu0 0.0
    %228 = vmatpush.xpose.msra.mxu0 0.0
    %229 = vmatpush.xpose.msra.mxu0 %v212
    %230 = vmatmul.f32.gmra.mxu0 %v209
    %v231 = vpop.f32.mrf.mxu0
    %v232 = vadd.f32 %v207, %v231
    %233 = vdwg.mxu0
    %vm234 = vcmask 57344
    %235 = vst.msk [vmem:[#allocation10] sm:$0x1] %vm234, %v232
    // Predicated region
    $region34: #{tpu_custom_call.1} parent=1 // pred_check
      _
    $region35: #{tpu_custom_call.1} parent=1 // pred_check_branch
      %237 = sbr.rel (0) target = $region37
    $region36: #{tpu_custom_call.1} parent=1 // pred_region
      %239 = vsyncadd [#allocation4], 0
      %s241 = sshll.u32 [#allocation10], 4
      %s242 = int_to_ptr.vmem [resolvable:$true] %s241
      %s243 = sshll.u32 %s4, 4
      %s244 = int_to_ptr.hbm [resolvable:$true] %s243
      %246 = dma.vmem_to_hbm [thread:$0]  %s242, 16, %s244, [#allocation4]
    $region37: #{tpu_custom_call.1} parent=1 // pred_fallthru
      _
    // Predicated region
    $region38: #{tpu_custom_call.1} parent=1 // pred_check
      _
    $region39: #{tpu_custom_call.1} parent=1 // pred_check_branch
      %248 = sbr.rel (0) target = $region41
    $region40: #{tpu_custom_call.1} parent=1 // pred_region
      %250 = dma.done [#allocation4], 16
    $region41: #{tpu_custom_call.1} parent=1 // pred_fallthru
      _
    %251 = vsyncpa [#allocation3], 1
    %252 = vsyncpa [#allocation6], 1
    %253 = vsyncpa [#allocation9], 1
    %254 = vsyncpa [#allocation4], 1

</llo_original>
